<compile_context>
chip_gen: v7x
topology: tpu7x:2x2x1
jax: 0.10.0
libtpu: 0.0.40
codegen_flags: <defaults>
</compile_context>

<pallas_src>
import functools

import jax
import jax.numpy as jnp
from jax import lax
from jax.experimental import pallas as pl
from jax.experimental.pallas import tpu as pltpu


def _pixel_ssm_kernel(xp_ref, w_ref, shift_ref, o_ref, *, ksize, out_h, out_w):
    # xp_ref    : (1, 1, Hp, Wp) padded input plane for (batch b, channel c) [VMEM]
    # w_ref     : (C, K*K)  BN-folded depthwise taps                         [SMEM]
    # shift_ref : (C,)      BN-folded per-channel shift                      [SMEM]
    # o_ref     : (1, 1, out_h, out_w)                                       [VMEM]
    c = pl.program_id(1)

    acc = jnp.zeros((out_h, out_w), dtype=jnp.float32)
    # K is small and static -> fully unrolled shift-multiply-accumulate (VPU).
    for ki in range(ksize):
        for kj in range(ksize):
            tap = w_ref[c, ki * ksize + kj]                      # scalar from SMEM
            window = xp_ref[0, 0, pl.ds(ki, out_h), pl.ds(kj, out_w)]
            acc = acc + tap * window.astype(jnp.float32)
    acc = acc + shift_ref[c]
    o_ref[...] = acc[None, None].astype(o_ref.dtype)


def pixel_ssm(x, conv_weight, conv_bias, bn_gamma, bn_beta, bn_mean, bn_var,
              *, eps=1e-5):
    """PixelSSM forward.

    x           : (B, C, H, W)
    conv_weight : (C, 1, K, K) depthwise conv weights (PyTorch layout)
    conv_bias   : (C,)
    bn_*        : (C,) BatchNorm2d affine params / running stats (inference).
    """
    B, C, H, W = x.shape
    K = conv_weight.shape[-1]
    p = K // 2
    out_h = H + 2 * p - K + 1
    out_w = W + 2 * p - K + 1
    Hp, Wp = H + 2 * p, W + 2 * p

    # Fold BN (inference) + conv bias into the taps (wrapper-side, one-time):
    #   y = scale_c * conv(x) + shift_c
    scale = bn_gamma / jnp.sqrt(bn_var + eps)                                  # (C,)
    w_eff = (conv_weight.reshape(C, K * K) * scale[:, None]).astype(jnp.float32)
    shift = ((conv_bias - bn_mean) * scale + bn_beta).astype(jnp.float32)      # (C,)

    x_pad = jnp.pad(x, ((0, 0), (0, 0), (p, p), (p, p)))

    kernel = functools.partial(_pixel_ssm_kernel, ksize=K, out_h=out_h, out_w=out_w)

    itemsize = jnp.dtype(x.dtype).itemsize
    cost = pl.CostEstimate(
        flops=2 * B * C * out_h * out_w * K * K,
        transcendentals=0,
        bytes_accessed=(B * C * Hp * Wp * itemsize          # read padded x
                        + B * C * out_h * out_w * itemsize  # write y
                        + C * K * K * 4 + C * 4),           # taps + shift
    )

    out = pl.pallas_call(
        kernel,
        out_shape=jax.ShapeDtypeStruct((B, C, out_h, out_w), x.dtype),
        grid_spec=pltpu.PrefetchScalarGridSpec(
            num_scalar_prefetch=0,
            grid=(B, C),
            in_specs=[
                # one padded (H, W) plane per grid step
                pl.BlockSpec((1, 1, Hp, Wp), lambda b, c: (b, c, 0, 0)),
                # small parameter tables -> SMEM, whole-array resident
                pl.BlockSpec(memory_space=pltpu.MemorySpace.SMEM),
                pl.BlockSpec(memory_space=pltpu.MemorySpace.SMEM),
            ],
            out_specs=pl.BlockSpec((1, 1, out_h, out_w),
                                   lambda b, c: (b, c, 0, 0)),
        ),
        compiler_params=pltpu.CompilerParams(
            dimension_semantics=("parallel", "parallel")),
        cost_estimate=cost,
    )(x_pad, w_eff, shift)
    return out


def pixel_ssm_reference(x, conv_weight, conv_bias, bn_gamma, bn_beta,
                        bn_mean, bn_var, *, eps=1e-5):
    B, C, H, W = x.shape
    K = conv_weight.shape[-1]
    p = K // 2
    y = lax.conv_general_dilated(
        x, conv_weight,
        window_strides=(1, 1),
        padding=[(p, p), (p, p)],
        dimension_numbers=("NCHW", "OIHW", "NCHW"),
        feature_group_count=C)
    y = y + conv_bias[None, :, None, None]
    inv = bn_gamma / jnp.sqrt(bn_var + eps)
    return ((y - bn_mean[None, :, None, None]) * inv[None, :, None, None]
            + bn_beta[None, :, None, None])


if __name__ == "__main__":
    key = jax.random.PRNGKey(0)
    k_x, k_w, k_b, k_g, k_bb, k_m, k_v = jax.random.split(key, 7)

    B, C, H, W, K = 2, 4, 16, 16, 3
    x = jax.random.normal(k_x, (B, C, H, W), dtype=jnp.float32)

    # Deterministic synthetic parameters for Conv2d(C, C, K, groups=C) + BatchNorm2d(C)
    conv_weight = jax.random.normal(k_w, (C, 1, K, K), dtype=jnp.float32) * 0.1
    conv_bias = jax.random.normal(k_b, (C,), dtype=jnp.float32) * 0.1
    bn_gamma = 1.0 + 0.1 * jax.random.normal(k_g, (C,), dtype=jnp.float32)
    bn_beta = 0.1 * jax.random.normal(k_bb, (C,), dtype=jnp.float32)
    bn_mean = 0.1 * jax.random.normal(k_m, (C,), dtype=jnp.float32)
    bn_var = jnp.abs(1.0 + 0.1 * jax.random.normal(k_v, (C,), dtype=jnp.float32))

    y = pixel_ssm(x, conv_weight, conv_bias, bn_gamma, bn_beta, bn_mean, bn_var)
    jax.block_until_ready(y)

    y_ref = pixel_ssm_reference(x, conv_weight, conv_bias, bn_gamma, bn_beta,
                                bn_mean, bn_var)
    assert jnp.allclose(y, y_ref, atol=1e-4, rtol=1e-4), "mismatch vs reference"

    print("KERNEL_OK")
</pallas_src>

<mosaic_0001>
module attributes {stable_mosaic.version = 11 : i64} {
  func.func @_pixel_ssm_kernel(%arg0: i32, %arg1: i32, %arg2: memref<1x1x18x18xf32, #tpu.memory_space<vmem>>, %arg3: memref<4x9xf32, #tpu.memory_space<smem>>, %arg4: memref<4xf32, #tpu.memory_space<smem>>, %arg5: memref<1x1x16x16xf32, #tpu.memory_space<vmem>>) attributes {dimension_semantics = [#tpu.dimension_semantics<parallel>, #tpu.dimension_semantics<parallel>], iteration_bounds = array<i64: 2, 4>, scalar_prefetch = 0 : i64, scratch_operands = 0 : i64, tpu.core_type = #tpu.core_type<tc>, window_params = [{transform_indices = @transform_0, window_bounds = array<i64: 1, 1, 18, 18>}, {transform_indices = @transform_1, window_bounds = array<i64: 4, 9>}, {transform_indices = @transform_2, window_bounds = array<i64: 4>}, {transform_indices = @transform_3, window_bounds = array<i64: 1, 1, 16, 16>}]} {
    %cst = arith.constant 0.000000e+00 : f32
    %0 = vector.broadcast %cst : f32 to vector<16x16xf32>
    %1 = arith.index_cast %arg1 : i32 to index
    %c0 = arith.constant 0 : index
    %2 = memref.load %arg3[%1, %c0] : memref<4x9xf32, #tpu.memory_space<smem>>
    %c0_0 = arith.constant 0 : index
    %c0_1 = arith.constant 0 : index
    %c0_2 = arith.constant 0 : index
    %c0_3 = arith.constant 0 : index
    %3 = vector.load %arg2[%c0_0, %c0_1, %c0_2, %c0_3] : memref<1x1x18x18xf32, #tpu.memory_space<vmem>>, vector<1x1x16x16xf32>
    %4 = vector.shape_cast %3 : vector<1x1x16x16xf32> to vector<16x16xf32>
    %5 = vector.broadcast %2 : f32 to vector<16x16xf32>
    %6 = arith.mulf %5, %4 : vector<16x16xf32>
    %7 = arith.addf %0, %6 : vector<16x16xf32>
    %8 = arith.index_cast %arg1 : i32 to index
    %c1 = arith.constant 1 : index
    %9 = memref.load %arg3[%8, %c1] : memref<4x9xf32, #tpu.memory_space<smem>>
    %c0_4 = arith.constant 0 : index
    %c0_5 = arith.constant 0 : index
    %c0_6 = arith.constant 0 : index
    %c1_7 = arith.constant 1 : index
    %10 = vector.load %arg2[%c0_4, %c0_5, %c0_6, %c1_7] : memref<1x1x18x18xf32, #tpu.memory_space<vmem>>, vector<1x1x16x16xf32>
    %11 = vector.shape_cast %10 : vector<1x1x16x16xf32> to vector<16x16xf32>
    %12 = vector.broadcast %9 : f32 to vector<16x16xf32>
    %13 = arith.mulf %12, %11 : vector<16x16xf32>
    %14 = arith.addf %7, %13 : vector<16x16xf32>
    %15 = arith.index_cast %arg1 : i32 to index
    %c2 = arith.constant 2 : index
    %16 = memref.load %arg3[%15, %c2] : memref<4x9xf32, #tpu.memory_space<smem>>
    %c0_8 = arith.constant 0 : index
    %c0_9 = arith.constant 0 : index
    %c0_10 = arith.constant 0 : index
    %c2_11 = arith.constant 2 : index
    %17 = vector.load %arg2[%c0_8, %c0_9, %c0_10, %c2_11] : memref<1x1x18x18xf32, #tpu.memory_space<vmem>>, vector<1x1x16x16xf32>
    %18 = vector.shape_cast %17 : vector<1x1x16x16xf32> to vector<16x16xf32>
    %19 = vector.broadcast %16 : f32 to vector<16x16xf32>
    %20 = arith.mulf %19, %18 : vector<16x16xf32>
    %21 = arith.addf %14, %20 : vector<16x16xf32>
    %22 = arith.index_cast %arg1 : i32 to index
    %c3 = arith.constant 3 : index
    %23 = memref.load %arg3[%22, %c3] : memref<4x9xf32, #tpu.memory_space<smem>>
    %c0_12 = arith.constant 0 : index
    %c0_13 = arith.constant 0 : index
    %c1_14 = arith.constant 1 : index
    %c0_15 = arith.constant 0 : index
    %24 = vector.load %arg2[%c0_12, %c0_13, %c1_14, %c0_15] : memref<1x1x18x18xf32, #tpu.memory_space<vmem>>, vector<1x1x16x16xf32>
    %25 = vector.shape_cast %24 : vector<1x1x16x16xf32> to vector<16x16xf32>
    %26 = vector.broadcast %23 : f32 to vector<16x16xf32>
    %27 = arith.mulf %26, %25 : vector<16x16xf32>
    %28 = arith.addf %21, %27 : vector<16x16xf32>
    %29 = arith.index_cast %arg1 : i32 to index
    %c4 = arith.constant 4 : index
    %30 = memref.load %arg3[%29, %c4] : memref<4x9xf32, #tpu.memory_space<smem>>
    %c0_16 = arith.constant 0 : index
    %c0_17 = arith.constant 0 : index
    %c1_18 = arith.constant 1 : index
    %c1_19 = arith.constant 1 : index
    %31 = vector.load %arg2[%c0_16, %c0_17, %c1_18, %c1_19] : memref<1x1x18x18xf32, #tpu.memory_space<vmem>>, vector<1x1x16x16xf32>
    %32 = vector.shape_cast %31 : vector<1x1x16x16xf32> to vector<16x16xf32>
    %33 = vector.broadcast %30 : f32 to vector<16x16xf32>
    %34 = arith.mulf %33, %32 : vector<16x16xf32>
    %35 = arith.addf %28, %34 : vector<16x16xf32>
    %36 = arith.index_cast %arg1 : i32 to index
    %c5 = arith.constant 5 : index
    %37 = memref.load %arg3[%36, %c5] : memref<4x9xf32, #tpu.memory_space<smem>>
    %c0_20 = arith.constant 0 : index
    %c0_21 = arith.constant 0 : index
    %c1_22 = arith.constant 1 : index
    %c2_23 = arith.constant 2 : index
    %38 = vector.load %arg2[%c0_20, %c0_21, %c1_22, %c2_23] : memref<1x1x18x18xf32, #tpu.memory_space<vmem>>, vector<1x1x16x16xf32>
    %39 = vector.shape_cast %38 : vector<1x1x16x16xf32> to vector<16x16xf32>
    %40 = vector.broadcast %37 : f32 to vector<16x16xf32>
    %41 = arith.mulf %40, %39 : vector<16x16xf32>
    %42 = arith.addf %35, %41 : vector<16x16xf32>
    %43 = arith.index_cast %arg1 : i32 to index
    %c6 = arith.constant 6 : index
    %44 = memref.load %arg3[%43, %c6] : memref<4x9xf32, #tpu.memory_space<smem>>
    %c0_24 = arith.constant 0 : index
    %c0_25 = arith.constant 0 : index
    %c2_26 = arith.constant 2 : index
    %c0_27 = arith.constant 0 : index
    %45 = vector.load %arg2[%c0_24, %c0_25, %c2_26, %c0_27] : memref<1x1x18x18xf32, #tpu.memory_space<vmem>>, vector<1x1x16x16xf32>
    %46 = vector.shape_cast %45 : vector<1x1x16x16xf32> to vector<16x16xf32>
    %47 = vector.broadcast %44 : f32 to vector<16x16xf32>
    %48 = arith.mulf %47, %46 : vector<16x16xf32>
    %49 = arith.addf %42, %48 : vector<16x16xf32>
    %50 = arith.index_cast %arg1 : i32 to index
    %c7 = arith.constant 7 : index
    %51 = memref.load %arg3[%50, %c7] : memref<4x9xf32, #tpu.memory_space<smem>>
    %c0_28 = arith.constant 0 : index
    %c0_29 = arith.constant 0 : index
    %c2_30 = arith.constant 2 : index
    %c1_31 = arith.constant 1 : index
    %52 = vector.load %arg2[%c0_28, %c0_29, %c2_30, %c1_31] : memref<1x1x18x18xf32, #tpu.memory_space<vmem>>, vector<1x1x16x16xf32>
    %53 = vector.shape_cast %52 : vector<1x1x16x16xf32> to vector<16x16xf32>
    %54 = vector.broadcast %51 : f32 to vector<16x16xf32>
    %55 = arith.mulf %54, %53 : vector<16x16xf32>
    %56 = arith.addf %49, %55 : vector<16x16xf32>
    %57 = arith.index_cast %arg1 : i32 to index
    %c8 = arith.constant 8 : index
    %58 = memref.load %arg3[%57, %c8] : memref<4x9xf32, #tpu.memory_space<smem>>
    %c0_32 = arith.constant 0 : index
    %c0_33 = arith.constant 0 : index
    %c2_34 = arith.constant 2 : index
    %c2_35 = arith.constant 2 : index
    %59 = vector.load %arg2[%c0_32, %c0_33, %c2_34, %c2_35] : memref<1x1x18x18xf32, #tpu.memory_space<vmem>>, vector<1x1x16x16xf32>
    %60 = vector.shape_cast %59 : vector<1x1x16x16xf32> to vector<16x16xf32>
    %61 = vector.broadcast %58 : f32 to vector<16x16xf32>
    %62 = arith.mulf %61, %60 : vector<16x16xf32>
    %63 = arith.addf %56, %62 : vector<16x16xf32>
    %64 = arith.index_cast %arg1 : i32 to index
    %65 = memref.load %arg4[%64] : memref<4xf32, #tpu.memory_space<smem>>
    %66 = vector.broadcast %65 : f32 to vector<16x16xf32>
    %67 = arith.addf %63, %66 : vector<16x16xf32>
    %68 = vector.shape_cast %67 : vector<16x16xf32> to vector<1x1x16x16xf32>
    %c0_36 = arith.constant 0 : index
    %c0_37 = arith.constant 0 : index
    %c0_38 = arith.constant 0 : index
    %c0_39 = arith.constant 0 : index
    %69 = vector.load %arg5[%c0_36, %c0_37, %c0_38, %c0_39] : memref<1x1x16x16xf32, #tpu.memory_space<vmem>>, vector<1x1x16x16xf32>
    tpu.vector_store %arg5[%c0_36, %c0_37, %c0_38, %c0_39], %68 {strides = array<i32>} : memref<1x1x16x16xf32, #tpu.memory_space<vmem>>, vector<1x1x16x16xf32>,
    return
  }
  func.func @transform_0(%arg0: i32, %arg1: i32) -> (i32, i32, i32, i32) {
    %c0_i32 = arith.constant 0 : i32
    %c0_i32_0 = arith.constant 0 : i32
    %c0_i32_1 = arith.constant 0 : i32
    return %arg0, %arg1, %c0_i32, %c0_i32_0 : i32, i32, i32, i32
  }
  func.func @transform_1(%arg0: i32, %arg1: i32) -> (i32, i32) {
    %c0_i32 = arith.constant 0 : i32
    %c0_i32_0 = arith.constant 0 : i32
    %c0_i32_1 = arith.constant 0 : i32
    return %c0_i32, %c0_i32_0 : i32, i32
  }
  func.func @transform_2(%arg0: i32, %arg1: i32) -> i32 {
    %c0_i32 = arith.constant 0 : i32
    %c0_i32_0 = arith.constant 0 : i32
    return %c0_i32 : i32
  }
  func.func @transform_3(%arg0: i32, %arg1: i32) -> (i32, i32, i32, i32) {
    %c0_i32 = arith.constant 0 : i32
    %c0_i32_0 = arith.constant 0 : i32
    %c0_i32_1 = arith.constant 0 : i32
    return %arg0, %arg1, %c0_i32, %c0_i32_0 : i32, i32, i32, i32
  }
}

</mosaic_0001>

<llo_original>
// kernel: tpu_custom_call.1
$region0: #{tpu_custom_call.1}
  #allocation0 [shape = 'u32[]', space=smem, size = 0x4, offset = 0x4, fixed_abs, tag = 'smem constant byte address 0x4 - core index']
  #allocation1 [shape = 'u32[144,128]{1,0:T(1,128)}', space=vmem, size = 0x12000, scoped, tag = 'internal scratch']
  %s0 = inlined_call_operand.vmem [shape: f32[2,4,18,18], index: 0, kind: input, shape index: {}]
  %s1 = inlined_call_operand.vmem [shape: f32[4,9], index: 1, kind: input, shape index: {}]
  %s2 = inlined_call_operand.vmem [shape: f32[4], index: 2, kind: input, shape index: {}]
  %s3 = inlined_call_operand.hbm [shape: f32[2,4,16,16], index: 3, kind: output, shape index: {}]
  %s4 = sld [smem:[#allocation0]]
  $region53: #{tpu_custom_call.1} parent=0
    _
  %s6 = ssub.s32 1, %s4
  %s7 = scalar_select 0, %s6, %s4
  $region1: #{tpu_custom_call.1} parent=0
    #allocation2 [shape = 'u8[2048]{0}', space=smem, size = 0x800, scoped, tag = 'input window, operand 1, single buffered']
    #allocation3 [shape = 's32[2]{0}', space=sflag, size = 0x8, scoped, tag = 'scoped memory for tpu_custom_call.1']
    #allocation4 [shape = 's32[2]{0}', space=sflag, size = 0x8, scoped, tag = 'scoped memory for tpu_custom_call.1']
    #allocation5 [shape = 'u8[512]{0}', space=smem, size = 0x200, scoped, tag = 'input window, operand 2, single buffered']
    #allocation6 [shape = 's32[1]{0}', space=sflag, size = 0x4, scoped, tag = 'scoped memory for tpu_custom_call.1']
    #allocation7 [shape = 'u8[16384]{0}', space=vmem, size = 0x4000, scoped, tag = 'output window, operand 0']
    %8 = vsyncpa [#allocation4], 0
    %9 = vsyncpa [#allocation6], 0
    %10 = vsyncpa [#allocation3], 0
    %s11 = scalar_lea.sflag [#allocation3], 1
    %12 = vsyncpa %s11, 0
    loop: start=0, step=1, limit=10
    $region2: #{tpu_custom_call.1} parent=1 // loop_pre_header
      _
    $region3: #{tpu_custom_call.1} parent=1 // loop_header
      %s14 = sphi 0, %s18
      %p15 = scmp.ge.s32.totalorder %s14, 10
      %s21 = sphi 0, %s33
      %s22 = sphi 0, %s29
      %s23 = sphi 0, %s21
      %s24 = sphi 0, %s22
      %s25 = sphi 0, %s23
      %s26 = sphi 0, %s24
      %s38 = sphi 0, %s40
      %s41 = sphi 0, %s38
      %s42 = sphi 0, %s41
      %s58 = sphi 0, %s42
      %s62 = sphi 0, %s62
      %s64 = sphi 0, %s62
      %s65 = sphi 0, %s64
      %s79 = sphi 0, %s65
      %s83 = sphi 0, %s83
      %s85 = sphi 0, %s83
      %s86 = sphi 0, %s85
      %s100 = sphi 0, %s86
      %s108 = sphi 0, %s110
      %s111 = sphi 0, %s108
      %s112 = sphi 0, %s111
      %s128 = sphi 0, %s112
    $region4: #{tpu_custom_call.1} parent=1 // loop_header_branch
      %17 = sbr.rel (%p15) target = $region8
    $region5: #{tpu_custom_call.1} parent=1 // loop_body
      %s19 = ssub.s32 %s14, 1
      %s20 = ssub.s32 %s14, 2
      %s27 = sadd.s32 1, %s22
      %p28 = scmp.ge.s32.totalorder %s27, 4
      %s29 = scalar_select %p28, 0, %s27
      %s30 = sadd.s32 1, %s21
      %s31 = scalar_select %p28, %s30, %s21
      %p32 = scmp.ge.s32.totalorder %s31, 2
      %s33 = scalar_select %p32, 0, %s31
      %s34 = ssub.s32 %s21, %s33
      %s35 = ssub.s32 %s22, %s29
      %s36 = sor.u32 %s34, %s35
      %p37 = scmp.eq.s32.totalorder %s36, 0
      %s39 = sadd.s32 %s38, 1
      %s40 = scalar_select %p37, %s38, %s39
      %p43 = pneg %p37
      %p44 = scmp.eq.s32.totalorder %s14, 7
      %p45 = por %p43, %p44
      %p46 = scmp.ne.s32.totalorder %s38, %s41
      %p47 = scmp.eq.s32.totalorder %s14, 0
      %p48 = por %p46, %p47
      %p49 = scmp.ne.s32.totalorder %s38, %s41
      %p50 = scmp.eq.s32.totalorder %s19, 7
      %p51 = por %p49, %p50
      %p52 = scmp.ne.s32.totalorder %s41, %s42
      %p53 = scmp.eq.s32.totalorder %s19, 0
      %p54 = por %p52, %p53
      %p55 = scmp.ne.s32.totalorder %s41, %s42
      %p56 = scmp.eq.s32.totalorder %s20, 7
      %p57 = por %p55, %p56
      %p59 = scmp.ne.s32.totalorder %s42, %s58
      %p60 = scmp.eq.s32.totalorder %s20, 0
      %p61 = por %p59, %p60
      %s63 = sadd.s32 %s62, 1
      %p66 = scmp.eq.s32.totalorder %s14, 7
      %p67 = scmp.ne.s32.totalorder %s62, %s64
      %p68 = scmp.eq.s32.totalorder %s14, 0
      %p69 = por %p67, %p68
      %p70 = scmp.ne.s32.totalorder %s62, %s64
      %p71 = scmp.eq.s32.totalorder %s19, 7
      %p72 = por %p70, %p71
      %p73 = scmp.ne.s32.totalorder %s64, %s65
      %p74 = scmp.eq.s32.totalorder %s19, 0
      %p75 = por %p73, %p74
      %p76 = scmp.ne.s32.totalorder %s64, %s65
      %p77 = scmp.eq.s32.totalorder %s20, 7
      %p78 = por %p76, %p77
      %p80 = scmp.ne.s32.totalorder %s65, %s79
      %p81 = scmp.eq.s32.totalorder %s20, 0
      %p82 = por %p80, %p81
      %s84 = sadd.s32 %s83, 1
      %p87 = scmp.eq.s32.totalorder %s14, 7
      %p88 = scmp.ne.s32.totalorder %s83, %s85
      %p89 = scmp.eq.s32.totalorder %s14, 0
      %p90 = por %p88, %p89
      %p91 = scmp.ne.s32.totalorder %s83, %s85
      %p92 = scmp.eq.s32.totalorder %s19, 7
      %p93 = por %p91, %p92
      %p94 = scmp.ne.s32.totalorder %s85, %s86
      %p95 = scmp.eq.s32.totalorder %s19, 0
      %p96 = por %p94, %p95
      %p97 = scmp.ne.s32.totalorder %s85, %s86
      %p98 = scmp.eq.s32.totalorder %s20, 7
      %p99 = por %p97, %p98
      %p101 = scmp.ne.s32.totalorder %s86, %s100
      %p102 = scmp.eq.s32.totalorder %s20, 0
      %p103 = por %p101, %p102
      %s104 = ssub.s32 %s21, %s33
      %s105 = ssub.s32 %s22, %s29
      %s106 = sor.u32 %s104, %s105
      %p107 = scmp.eq.s32.totalorder %s106, 0
      %s109 = sadd.s32 %s108, 1
      %s110 = scalar_select %p107, %s108, %s109
      %p113 = pneg %p107
      %p114 = scmp.eq.s32.totalorder %s14, 7
      %p115 = por %p113, %p114
      %p116 = scmp.ne.s32.totalorder %s108, %s111
      %p117 = scmp.eq.s32.totalorder %s14, 0
      %p118 = por %p116, %p117
      %p119 = scmp.ne.s32.totalorder %s108, %s111
      %p120 = scmp.eq.s32.totalorder %s19, 7
      %p121 = por %p119, %p120
      %p122 = scmp.ne.s32.totalorder %s111, %s112
      %p123 = scmp.eq.s32.totalorder %s19, 0
      %p124 = por %p122, %p123
      %p125 = scmp.ne.s32.totalorder %s111, %s112
      %p126 = scmp.eq.s32.totalorder %s20, 7
      %p127 = por %p125, %p126
      %p129 = scmp.ne.s32.totalorder %s112, %s128
      %p130 = scmp.eq.s32.totalorder %s20, 0
      %p131 = por %p129, %p130
      %p132 = scmp.le.s32.totalorder 1, %s14
      %p133 = scmp.lt.s32.totalorder %s14, 9
      %p134 = pnand %p132, %p133
      %p135 = pneg %p134
      // Predicated region
      $region9: #{tpu_custom_call.1} parent=5 // pred_check
        _
      $region10: #{tpu_custom_call.1} parent=5 // pred_check_branch
        %137 = sbr.rel (%p134) target = $region12
      $region11: #{tpu_custom_call.1} parent=5 // pred_region
        %s138 = ssub.s32 %s14, 1
        // Predicated region
        $region13: #{tpu_custom_call.1} parent=11 // pred_check
          %p139 = pneg %p75
        $region14: #{tpu_custom_call.1} parent=11 // pred_check_branch
          %141 = sbr.rel (%p139) target = $region16
        $region15: #{tpu_custom_call.1} parent=11 // pred_region
          %s143 = ssub.s32 64, 64
          %144 = vsyncadd [#allocation4], %s143
          %s146 = sshll.u32 %s1, 4
          %s147 = int_to_ptr.vmem [resolvable:$true] %s146
          %149 = dma.vmem_to_smem %s147, 64, [#allocation2], [#allocation4]
        $region16: #{tpu_custom_call.1} parent=11 // pred_fallthru
          _
        // Predicated region
        $region17: #{tpu_custom_call.1} parent=11 // pred_check
          %p150 = pneg %p96
        $region18: #{tpu_custom_call.1} parent=11 // pred_check_branch
          %152 = sbr.rel (%p150) target = $region20
        $region19: #{tpu_custom_call.1} parent=11 // pred_region
          %s154 = ssub.s32 16, 16
          %155 = vsyncadd [#allocation6], %s154
          %s157 = sshll.u32 %s2, 4
          %s158 = int_to_ptr.vmem [resolvable:$true] %s157
          %160 = dma.vmem_to_smem %s158, 16, [#allocation5], [#allocation6]
        $region20: #{tpu_custom_call.1} parent=11 // pred_fallthru
          _
      $region12: #{tpu_custom_call.1} parent=5 // pred_fallthru
        _
      %p161 = scmp.lt.s32.totalorder %s14, 8
      // Predicated region
      $region21: #{tpu_custom_call.1} parent=5 // pred_check
        %p162 = pneg %p161
      $region22: #{tpu_custom_call.1} parent=5 // pred_check_branch
        %164 = sbr.rel (%p162) target = $region24
      $region23: #{tpu_custom_call.1} parent=5 // pred_region
        // Predicated region
        $region25: #{tpu_custom_call.1} parent=23 // pred_check
          %p165 = pneg %p48
        $region26: #{tpu_custom_call.1} parent=23 // pred_check_branch
          %167 = sbr.rel (%p165) target = $region28
        $region27: #{tpu_custom_call.1} parent=23 // pred_region
          %p168 = scmp.lt.s32.totalorder %s21, 1
          %s169 = scalar_select %p168, %s21, 1
          %p170 = scmp.lt.s32.totalorder %s22, 3
          %s171 = scalar_select %p170, %s22, 3
          %s172 = smul.addr %s171, 3
          %s173 = smul.addr %s169, 12
          %s174 = sadd.s32 %s172, %s173
          %s175 = smul.addr %s174, 8
          %s176 = scalar_lea.vmem %s0, %s175
        $region28: #{tpu_custom_call.1} parent=23 // pred_fallthru
          _
      $region24: #{tpu_custom_call.1} parent=5 // pred_fallthru
        _
      %p177 = scmp.le.s32.totalorder 1, %s14
      %p178 = scmp.lt.s32.totalorder %s14, 9
      %p179 = pnand %p177, %p178
      %p180 = pneg %p179
      // Predicated region
      $region29: #{tpu_custom_call.1} parent=5 // pred_check
        _
      $region30: #{tpu_custom_call.1} parent=5 // pred_check_branch
        %182 = sbr.rel (%p179) target = $region32
      $region31: #{tpu_custom_call.1} parent=5 // pred_region
        %s183 = ssub.s32 %s14, 1
        // Predicated region
        $region33: #{tpu_custom_call.1} parent=31 // pred_check
          %p184 = pneg %p75
        $region34: #{tpu_custom_call.1} parent=31 // pred_check_branch
          %186 = sbr.rel (%p184) target = $region36
        $region35: #{tpu_custom_call.1} parent=31 // pred_region
          %187 = dma.done [#allocation4], 64
        $region36: #{tpu_custom_call.1} parent=31 // pred_fallthru
          _
        // Predicated region
        $region37: #{tpu_custom_call.1} parent=31 // pred_check
          %p188 = pneg %p96
        $region38: #{tpu_custom_call.1} parent=31 // pred_check_branch
          %190 = sbr.rel (%p188) target = $region40
        $region39: #{tpu_custom_call.1} parent=31 // pred_region
          %191 = dma.done [#allocation6], 16
        $region40: #{tpu_custom_call.1} parent=31 // pred_fallthru
          _
        %192 = sfence
        %p193 = scmp.lt.s32.totalorder %s23, 1
        %s194 = scalar_select %p193, %s23, 1
        %p195 = scmp.lt.s32.totalorder %s24, 3
        %s196 = scalar_select %p195, %s24, 3
        %s197 = smul.addr %s196, 3
        %s198 = smul.addr %s194, 12
        %s199 = sadd.s32 %s197, %s198
        %s200 = smul.addr %s199, 8
        %s201 = scalar_lea.vmem %s0, %s200
        %p202 = pneg %p54
        %p203 = pneg %p51
        %p204 = pneg %p75
        %p205 = pneg %p72
        %p206 = pneg %p96
        %p207 = pneg %p93
        %p208 = pneg %p124
        %p209 = pneg %p121
        %s210 = sand.u32 %s111, 1
        %s211 = scalar_lea.sflag [#allocation3], %s210
        %s212 = sand.u32 %s111, 1
        %s213 = smul.addr %s212, 16
        %s214 = scalar_lea.vmem [#allocation7], %s213
        %p215 = scmp.lt.s32.totalorder %s23, 1
        %s216 = scalar_select %p215, %s23, 1
        %p217 = scmp.lt.s32.totalorder %s24, 3
        %s218 = scalar_select %p217, %s24, 3
        %s219 = smul.addr %s218, 3
        %s220 = smul.addr %s216, 12
        %s221 = sadd.s32 %s219, %s220
        %s222 = smul.addr %s221, 8
        %s223 = scalar_lea.vmem %s0, %s222
        %s224 = smul.u32 %s24, 128
        %s225 = sld [smem:[#allocation2 + %s224]]
        %v226 = vld [vmem:[%s223] sm:$0xff]
        %v227 = vld [vmem:[%s223 + $0x8] sm:$0xff]
        %v228 = vstv %s225
        %v229 = vmul.f32 %v228, %v226
        %v230 = vmul.f32 %v228, %v227
        %v231 = vadd.f32 %v229, 0.0
        %v232 = vadd.f32 %v230, 0.0
        %s233 = sadd.s32 %s224, 1
        %s234 = sld [smem:[#allocation2 + %s233]]
        %v235 = vstv %s234
        %v236 = vmul.f32 %v235, %v226
        %v237 = vmul.f32 %v235, %v227
        %240 = vrot.lane.b32.xlu0 %v236, 127
        %v241 = vpop.permute.xlu0 %240
        %242 = vrot.lane.b32.xlu0 %v237, 127
        %v243 = vpop.permute.xlu0 %242
        %v246 = vadd.f32 %v231, %v241
        %v247 = vadd.f32 %v232, %v243
        %s248 = sadd.s32 %s224, 2
        %s249 = sld [smem:[#allocation2 + %s248]]
        %v250 = vstv %s249
        %v251 = vmul.f32 %v250, %v226
        %v252 = vmul.f32 %v250, %v227
        %255 = vrot.lane.b32.xlu0 %v251, 126
        %v256 = vpop.permute.xlu0 %255
        %257 = vrot.lane.b32.xlu0 %v252, 126
        %v258 = vpop.permute.xlu0 %257
        %v261 = vadd.f32 %v246, %v256
        %v262 = vadd.f32 %v247, %v258
        %s263 = sadd.s32 %s224, 3
        %s264 = sld [smem:[#allocation2 + %s263]]
        %v265 = vld [vmem:[%s223 + $0x1] sm:$0xff]
        %v266 = vld [vmem:[%s223 + $0x9] sm:$0xff]
        %v267 = vstv %s264
        %v268 = vmul.f32 %v267, %v265
        %v269 = vmul.f32 %v267, %v266
        %v270 = vadd.f32 %v261, %v268
        %v271 = vadd.f32 %v262, %v269
        %s272 = sadd.s32 %s224, 4
        %s273 = sld [smem:[#allocation2 + %s272]]
        %v274 = vstv %s273
        %v275 = vmul.f32 %v274, %v265
        %v276 = vmul.f32 %v274, %v266
        %279 = vrot.lane.b32.xlu0 %v275, 127
        %v280 = vpop.permute.xlu0 %279
        %281 = vrot.lane.b32.xlu0 %v276, 127
        %v282 = vpop.permute.xlu0 %281
        %v285 = vadd.f32 %v270, %v280
        %v286 = vadd.f32 %v271, %v282
        %s287 = sadd.s32 %s224, 5
        %s288 = sld [smem:[#allocation2 + %s287]]
        %v289 = vstv %s288
        %v290 = vmul.f32 %v289, %v265
        %v291 = vmul.f32 %v289, %v266
        %294 = vrot.lane.b32.xlu0 %v290, 126
        %v295 = vpop.permute.xlu0 %294
        %296 = vrot.lane.b32.xlu0 %v291, 126
        %v297 = vpop.permute.xlu0 %296
        %v300 = vadd.f32 %v285, %v295
        %v301 = vadd.f32 %v286, %v297
        %s302 = sadd.s32 %s224, 6
        %s303 = sld [smem:[#allocation2 + %s302]]
        %v304 = vld [vmem:[%s223 + $0x2] sm:$0xff]
        %v305 = vld [vmem:[%s223 + $0xa] sm:$0xff]
        %v306 = vstv %s303
        %v307 = vmul.f32 %v306, %v304
        %v308 = vmul.f32 %v306, %v305
        %v309 = vadd.f32 %v300, %v307
        %v310 = vadd.f32 %v301, %v308
        %s311 = sadd.s32 %s224, 7
        %s312 = sld [smem:[#allocation2 + %s311]]
        %v313 = vstv %s312
        %v314 = vmul.f32 %v313, %v304
        %v315 = vmul.f32 %v313, %v305
        %318 = vrot.lane.b32.xlu0 %v314, 127
        %v319 = vpop.permute.xlu0 %318
        %320 = vrot.lane.b32.xlu0 %v315, 127
        %v321 = vpop.permute.xlu0 %320
        %v324 = vadd.f32 %v309, %v319
        %v325 = vadd.f32 %v310, %v321
        %s326 = sadd.s32 %s224, 8
        %s327 = sld [smem:[#allocation2 + %s326]]
        %v328 = vstv %s327
        %v329 = vmul.f32 %v328, %v304
        %v330 = vmul.f32 %v328, %v305
        %333 = vrot.lane.b32.xlu0 %v329, 126
        %v334 = vpop.permute.xlu0 %333
        %335 = vrot.lane.b32.xlu0 %v330, 126
        %v336 = vpop.permute.xlu0 %335
        %v339 = vadd.f32 %v324, %v334
        %v340 = vadd.f32 %v325, %v336
        %s341 = sld [smem:[#allocation5 + %s24]]
        %v342 = vstv %s341
        %v343 = vadd.f32 %v339, %v342
        %v344 = vadd.f32 %v340, %v342
        %vm345 = vcmask 130048
        %346 = vst.msk [vmem:[%s214] sm:$0xff] %vm345, %v343
        %347 = vst.msk [vmem:[%s214 + $0x8] sm:$0xff] %vm345, %v344
        %s348 = sand.u32 %s111, 1
        %s349 = scalar_lea.sflag [#allocation3], %s348
        %s350 = sand.u32 %s111, 1
        %s351 = smul.addr %s350, 16
        %s352 = scalar_lea.vmem [#allocation7], %s351
        // Predicated region
        $region41: #{tpu_custom_call.1} parent=31 // pred_check
          %p353 = pneg %p121
        $region42: #{tpu_custom_call.1} parent=31 // pred_check_branch
          %355 = sbr.rel (%p353) target = $region44
        $region43: #{tpu_custom_call.1} parent=31 // pred_region
          %s357 = ssub.s32 256, 256
          %358 = vsyncadd %s349, %s357
          %s359 = smul.addr %s24, 2
          %s360 = smul.addr %s23, 8
          %s361 = sadd.s32 %s359, %s360
          %s362 = smul.addr %s361, 128
          %s363 = scalar_lea.hbm %s3, %s362
          %s364 = sshll.u32 %s352, 4
          %s365 = int_to_ptr.vmem [resolvable:$true] %s364
          %370 = dma.vmem_to_hbm [thread:$0]  %s365, 256, %s363, %s349, 128, 128, 8
        $region44: #{tpu_custom_call.1} parent=31 // pred_fallthru
          _
      $region32: #{tpu_custom_call.1} parent=5 // pred_fallthru
        _
      %p371 = scmp.le.s32.totalorder 2, %s14
      // Predicated region
      $region45: #{tpu_custom_call.1} parent=5 // pred_check
        %p372 = pneg %p371
      $region46: #{tpu_custom_call.1} parent=5 // pred_check_branch
        %374 = sbr.rel (%p372) target = $region48
      $region47: #{tpu_custom_call.1} parent=5 // pred_region
        %s375 = ssub.s32 %s14, 2
        // Predicated region
        $region49: #{tpu_custom_call.1} parent=47 // pred_check
          %p376 = pneg %p127
        $region50: #{tpu_custom_call.1} parent=47 // pred_check_branch
          %378 = sbr.rel (%p376) target = $region52
        $region51: #{tpu_custom_call.1} parent=47 // pred_region
          %s379 = sand.u32 %s112, 1
          %s380 = scalar_lea.sflag [#allocation3], %s379
          %s381 = sand.u32 %s112, 1
          %s382 = smul.addr %s381, 16
          %s383 = scalar_lea.vmem [#allocation7], %s382
          %384 = dma.done %s380, 256
        $region52: #{tpu_custom_call.1} parent=47 // pred_fallthru
          _
      $region48: #{tpu_custom_call.1} parent=5 // pred_fallthru
        _
    $region6: #{tpu_custom_call.1} parent=1 // loop_footer
      %s18 = sadd.s32 1, %s14
    $region7: #{tpu_custom_call.1} parent=1 // loop_footer_branch
      %13 = sbr.rel target = $region3
    $region8: #{tpu_custom_call.1} parent=1 // loop_exit
      _
    %385 = vsyncpa [#allocation3], 1
    %s386 = scalar_lea.sflag [#allocation3], 1
    %387 = vsyncpa %s386, 1
    %388 = vsyncpa [#allocation4], 1
    %s389 = scalar_lea.sflag [#allocation4], 1
    %390 = vsyncpa %s389, 1
    %391 = vsyncpa [#allocation6], 1

</llo_original>
